<compile_context>
chip_gen: v5e
topology: v5e:2x2
jax: 0.10.0
libtpu: 0.0.40
codegen_flags: <defaults>
</compile_context>

<pallas_src>
from functools import partial

import jax
import jax.numpy as jnp
from jax.experimental import pallas as pl
from jax.experimental.pallas import tpu as pltpu

OUT_PAD = 128  # lane-dense MXU rhs width (padded weight columns)


def linear_relu_kernel(x_ref, wt_ref, b_ref, o_ref):
    # x_ref:  (TB, IN)       VMEM, tiled over batch
    # wt_ref: (IN, OUT_PAD)  VMEM, resident across the batch grid
    # b_ref:  (1,  OUT)      VMEM, resident across the batch grid
    # o_ref:  (TB, OUT)      VMEM, narrow store -> narrow HBM writeback
    y = jnp.dot(x_ref[...], wt_ref[...], preferred_element_type=jnp.float32)
    out_f = o_ref.shape[-1]
    o_ref[...] = jnp.maximum(y[:, :out_f] + b_ref[...], 0.0)


def prepare_params(weight, bias):
    """One-time (init-path) prep.

    weight: (OUT, IN) f32  -> wt_pad: (IN, OUT_PAD) f32 (transposed, zero-padded)
    bias:   (OUT,)    f32  -> b2d:    (1, OUT) f32
    """
    out_features, in_features = weight.shape
    wt_pad = jnp.zeros((in_features, OUT_PAD), jnp.float32)
    wt_pad = wt_pad.at[:, :out_features].set(weight.T.astype(jnp.float32))
    b2d = bias.astype(jnp.float32).reshape(1, out_features)
    return wt_pad, b2d


@partial(jax.jit, static_argnames=("tb",))
def linear_relu(x, wt_pad, b2d, *, tb=2048):
    """x: (B, IN) f32 -> relu(x @ W.T + b): (B, OUT) f32."""
    B, IN = x.shape
    OUT = b2d.shape[-1]
    OUTP = wt_pad.shape[-1]

    # Batch tile: full batch if small (block == full dim is always legal),
    # otherwise a multiple-of-8 tile with Pallas masking the partial last block.
    tb = max(8, (tb // 8) * 8)
    TB = B if B <= tb else tb
    grid = (pl.cdiv(B, TB),)

    return pl.pallas_call(
        linear_relu_kernel,
        out_shape=jax.ShapeDtypeStruct((B, OUT), jnp.float32),
        grid=grid,
        in_specs=[
            pl.BlockSpec((TB, IN), lambda i: (i, 0)),     # x: tiled over batch
            pl.BlockSpec((IN, OUTP), lambda i: (0, 0)),   # weight: resident
            pl.BlockSpec((1, OUT), lambda i: (0, 0)),     # bias: resident
        ],
        out_specs=pl.BlockSpec((TB, OUT), lambda i: (i, 0)),
        compiler_params=pltpu.CompilerParams(
            dimension_semantics=("parallel",)),           # 2-TC split on v7x
    )(x, wt_pad, b2d)


if __name__ == "__main__":
    key = jax.random.PRNGKey(0)
    k_x, k_w, k_b, k_x2 = jax.random.split(key, 4)

    B, IN, OUT = 8, 100, 10

    # Deterministic "parameter init" mirroring nn.Linear default:
    # uniform(-1/sqrt(IN), 1/sqrt(IN)) for weight and bias.
    bound = 1.0 / jnp.sqrt(jnp.float32(IN))
    weight = jax.random.uniform(k_w, (OUT, IN), jnp.float32, -bound, bound)
    bias = jax.random.uniform(k_b, (OUT,), jnp.float32, -bound, bound)

    # One-time parameter prep (outside the per-call hot path).
    wt_pad, b2d = prepare_params(weight, bias)

    # Small-batch path (single grid step, full-batch block, B not mult of 128).
    x = jax.random.normal(k_x, (B, IN), jnp.float32)
    out = jax.block_until_ready(linear_relu(x, wt_pad, b2d))
    ref = jnp.maximum(x @ weight.T + bias, 0.0)
    assert out.shape == (B, OUT)
    assert jnp.allclose(out, ref, atol=1e-5, rtol=1e-5)

    # Ragged multi-tile path (exercises the batch grid + masked partial block).
    B2 = 37
    x2 = jax.random.normal(k_x2, (B2, IN), jnp.float32)
    out2 = jax.block_until_ready(linear_relu(x2, wt_pad, b2d, tb=16))
    ref2 = jnp.maximum(x2 @ weight.T + bias, 0.0)
    assert out2.shape == (B2, OUT)
    assert jnp.allclose(out2, ref2, atol=1e-5, rtol=1e-5)

    print("KERNEL_OK")
</pallas_src>

<mosaic_0001>
module attributes {stable_mosaic.version = 11 : i64} {
  func.func @linear_relu_kernel(%arg0: i32, %arg1: memref<8x100xf32, #tpu.memory_space<vmem>>, %arg2: memref<100x128xf32, #tpu.memory_space<vmem>>, %arg3: memref<1x10xf32, #tpu.memory_space<vmem>>, %arg4: memref<8x10xf32, #tpu.memory_space<vmem>>) attributes {dimension_semantics = [#tpu.dimension_semantics<parallel>], iteration_bounds = array<i64: 1>, scalar_prefetch = 0 : i64, scratch_operands = 0 : i64, tpu.core_type = #tpu.core_type<tc>, window_params = [{transform_indices = @transform_0, window_bounds = array<i64: 8, 100>}, {pipeline_mode = #tpu.pipeline_mode<synchronous>, transform_indices = @transform_1, window_bounds = array<i64: 100, 128>}, {pipeline_mode = #tpu.pipeline_mode<synchronous>, transform_indices = @transform_2, window_bounds = array<i64: 1, 10>}, {transform_indices = @transform_3, window_bounds = array<i64: 8, 10>}]} {
    %c0 = arith.constant 0 : index
    %c0_0 = arith.constant 0 : index
    %0 = vector.load %arg1[%c0, %c0_0] : memref<8x100xf32, #tpu.memory_space<vmem>>, vector<8x100xf32>
    %c0_1 = arith.constant 0 : index
    %c0_2 = arith.constant 0 : index
    %1 = vector.load %arg2[%c0_1, %c0_2] : memref<100x128xf32, #tpu.memory_space<vmem>>, vector<100x128xf32>
    %cst = arith.constant dense<0.000000e+00> : vector<8x128xf32>
    %2 = tpu.matmul %0, %1, %cst {dimension_numbers = #tpu.dot_dimension_numbers<[1], [0], [0], [1], [0, 0, 1, 1], [], []>} : vector<8x100xf32>, vector<100x128xf32>, vector<8x128xf32> -> vector<8x128xf32>
    %3 = vector.extract_strided_slice %2 {offsets = [0, 0], sizes = [8, 10], strides = [1, 1]} : vector<8x128xf32> to vector<8x10xf32>
    %c0_3 = arith.constant 0 : index
    %c0_4 = arith.constant 0 : index
    %4 = vector.load %arg3[%c0_3, %c0_4] : memref<1x10xf32, #tpu.memory_space<vmem>>, vector<1x10xf32>
    %5 = vector.broadcast %4 : vector<1x10xf32> to vector<8x10xf32>
    %6 = arith.addf %3, %5 : vector<8x10xf32>
    %cst_5 = arith.constant 0.000000e+00 : f32
    %7 = vector.broadcast %cst_5 : f32 to vector<8x10xf32>
    %8 = arith.maximumf %6, %7 : vector<8x10xf32>
    %c0_6 = arith.constant 0 : index
    %c0_7 = arith.constant 0 : index
    %9 = vector.load %arg4[%c0_6, %c0_7] : memref<8x10xf32, #tpu.memory_space<vmem>>, vector<8x10xf32>
    tpu.vector_store %arg4[%c0_6, %c0_7], %8 {strides = array<i32>} : memref<8x10xf32, #tpu.memory_space<vmem>>, vector<8x10xf32>,
    return
  }
  func.func @transform_0(%arg0: i32) -> (i32, i32) {
    %c0_i32 = arith.constant 0 : i32
    %c0_i32_0 = arith.constant 0 : i32
    return %arg0, %c0_i32 : i32, i32
  }
  func.func @transform_1(%arg0: i32) -> (i32, i32) {
    %c0_i32 = arith.constant 0 : i32
    %c0_i32_0 = arith.constant 0 : i32
    %c0_i32_1 = arith.constant 0 : i32
    return %c0_i32, %c0_i32_0 : i32, i32
  }
  func.func @transform_2(%arg0: i32) -> (i32, i32) {
    %c0_i32 = arith.constant 0 : i32
    %c0_i32_0 = arith.constant 0 : i32
    %c0_i32_1 = arith.constant 0 : i32
    return %c0_i32, %c0_i32_0 : i32, i32
  }
  func.func @transform_3(%arg0: i32) -> (i32, i32) {
    %c0_i32 = arith.constant 0 : i32
    %c0_i32_0 = arith.constant 0 : i32
    return %arg0, %c0_i32 : i32, i32
  }
}

</mosaic_0001>

<llo_original>
// kernel: linear_relu.1
$region0: #{linear_relu.1}
  #allocation0 [shape = 'u32[]', space=smem, size = 0x4, offset = 0x4, fixed_abs, tag = 'smem constant byte address 0x4 - core index']
  #allocation1 [shape = 'u32[72,128]{1,0:T(1,128)}', space=vmem, size = 0x9000, scoped, tag = 'internal scratch']
  %s0 = inlined_call_operand.hbm [shape: f32[8,100], index: 0, kind: input, shape index: {}]
  %s1 = inlined_call_operand.hbm [shape: f32[100,128], index: 1, kind: input, shape index: {}]
  %s2 = inlined_call_operand.vmem [shape: f32[1,10], index: 2, kind: input, shape index: {}]
  %s3 = inlined_call_operand.hbm [shape: f32[8,10], index: 3, kind: output, shape index: {}]
  %s4 = sld [smem:[#allocation0]]
  $region30: #{linear_relu.1} parent=0
    _
  %s6 = ssub.s32 1, %s4
  %s7 = scalar_select 0, %s6, %s4
  $region1: #{linear_relu.1} parent=0
    #allocation2 [shape = 'u8[4096]{0}', space=vmem, size = 0x1000, scoped, tag = 'input window, operand 0, single buffered']
    #allocation3 [shape = 's32[1]{0}', space=sflag, size = 0x4, scoped, tag = 'scoped memory for linear_relu.1']
    #allocation4 [shape = 's32[1]{0}', space=sflag, size = 0x4, scoped, tag = 'scoped memory for linear_relu.1']
    #allocation5 [shape = 'u8[53248]{0}', space=vmem, size = 0xd000, scoped, tag = 'input window, operand 1, single buffered']
    #allocation6 [shape = 's32[1]{0}', space=sflag, size = 0x4, scoped, tag = 'scoped memory for linear_relu.1']
    #allocation7 [shape = 'u8[4096]{0}', space=vmem, size = 0x1000, scoped, tag = 'output window, operand 0, single buffered']
    %8 = vsyncpa [#allocation3], 0
    %9 = vsyncpa [#allocation6], 0
    %10 = vsyncpa [#allocation4], 0
    // Predicated region
    $region2: #{linear_relu.1} parent=1 // pred_check
      _
    $region3: #{linear_relu.1} parent=1 // pred_check_branch
      %12 = sbr.rel (0) target = $region5
    $region4: #{linear_relu.1} parent=1 // pred_region
      %14 = vsyncadd [#allocation3], 0
      %s16 = sshll.u32 %s0, 4
      %s17 = int_to_ptr.hbm [resolvable:$true] %s16
      %s18 = sshll.u32 [#allocation2], 4
      %s19 = int_to_ptr.vmem [resolvable:$true] %s18
      %21 = dma.hbm_to_vmem [thread:$0]  %s17, 128, %s19, [#allocation3]
    $region5: #{linear_relu.1} parent=1 // pred_fallthru
      _
    // Predicated region
    $region6: #{linear_relu.1} parent=1 // pred_check
      _
    $region7: #{linear_relu.1} parent=1 // pred_check_branch
      %23 = sbr.rel (0) target = $region9
    $region8: #{linear_relu.1} parent=1 // pred_region
      %25 = vsyncadd [#allocation6], 0
      %s26 = sshll.u32 %s1, 4
      %s27 = int_to_ptr.hbm [resolvable:$true] %s26
      %s28 = sshll.u32 [#allocation5], 4
      %s29 = int_to_ptr.vmem [resolvable:$true] %s28
      %34 = dma.hbm_to_vmem [thread:$0]  %s27, 1664, %s29, [#allocation6], 128, 128, 8
    $region9: #{linear_relu.1} parent=1 // pred_fallthru
      _
    // Predicated region
    $region10: #{linear_relu.1} parent=1 // pred_check
      _
    $region11: #{linear_relu.1} parent=1 // pred_check_branch
      %36 = sbr.rel (0) target = $region13
    $region12: #{linear_relu.1} parent=1 // pred_region
      _
    $region13: #{linear_relu.1} parent=1 // pred_fallthru
      _
    // Predicated region
    $region14: #{linear_relu.1} parent=1 // pred_check
      _
    $region15: #{linear_relu.1} parent=1 // pred_check_branch
      %38 = sbr.rel (0) target = $region17
    $region16: #{linear_relu.1} parent=1 // pred_region
      %40 = dma.done [#allocation3], 128
    $region17: #{linear_relu.1} parent=1 // pred_fallthru
      _
    // Predicated region
    $region18: #{linear_relu.1} parent=1 // pred_check
      _
    $region19: #{linear_relu.1} parent=1 // pred_check_branch
      %42 = sbr.rel (0) target = $region21
    $region20: #{linear_relu.1} parent=1 // pred_region
      %44 = dma.done [#allocation6], 1664
    $region21: #{linear_relu.1} parent=1 // pred_fallthru
      _
    %v45 = vld [vmem:[#allocation2] sm:$0xff]
    %v46 = vld [vmem:[#allocation5] sm:$0xff]
    %v47 = vld [vmem:[#allocation5 + $0x8] sm:$0xff]
    %v48 = vld [vmem:[#allocation5 + $0x10] sm:$0xff]
    %v49 = vld [vmem:[#allocation5 + $0x18] sm:$0xff]
    %v50 = vld [vmem:[#allocation5 + $0x20] sm:$0xff]
    %v51 = vld [vmem:[#allocation5 + $0x28] sm:$0xff]
    %v52 = vld [vmem:[#allocation5 + $0x30] sm:$0xff]
    %v53 = vld [vmem:[#allocation5 + $0x38] sm:$0xff]
    %v54 = vld [vmem:[#allocation5 + $0x40] sm:$0xff]
    %v55 = vld [vmem:[#allocation5 + $0x48] sm:$0xff]
    %v56 = vld [vmem:[#allocation5 + $0x50] sm:$0xff]
    %v57 = vld [vmem:[#allocation5 + $0x58] sm:$0xff]
    %v58 = vld [vmem:[#allocation5 + $0x60] sm:$0xf]
    %vm59 = vcmask 818176
    %v61 = vsel %vm59, %v45, 0
    %vm63 = vcmask 1043456
    %v65 = vsel %vm63, %v58, 0
    %67 = vmatpush.msra.mxu0 0.0
    %68 = vmatpush.msra.mxu0 0.0
    %69 = vmatpush.msra.mxu0 0.0
    %70 = vmatpush.msra.mxu0 %v65
    %71 = vmatpush.msra.mxu0 %v57
    %72 = vmatpush.msra.mxu0 %v56
    %73 = vmatpush.msra.mxu0 %v55
    %74 = vmatpush.msra.mxu0 %v54
    %75 = vmatpush.msra.mxu0 %v53
    %76 = vmatpush.msra.mxu0 %v52
    %77 = vmatpush.msra.mxu0 %v51
    %78 = vmatpush.msra.mxu0 %v50
    %79 = vmatpush.msra.mxu0 %v49
    %80 = vmatpush.msra.mxu0 %v48
    %81 = vmatpush.msra.mxu0 %v47
    %82 = vmatpush.msra.mxu0 %v46
    %83 = vmatmul.f32.gmra.mxu0 %v61
    %v84 = vpop.f32.mrf.mxu0
    %v85 = vadd.f32 0.0, %v84
    %86 = vdwg.mxu0
    %v87 = vld [vmem:[%s2] sm:$0x1]
    %v89 = vperm.slane %v87, 0
    %v91 = vadd.f32 %v85, %v89
    %v92 = vmax.f32 %v91, 0.0
    %vm93 = vcmask 80896
    %94 = vst.msk [vmem:[#allocation7] sm:$0xff] %vm93, %v92
    // Predicated region
    $region22: #{linear_relu.1} parent=1 // pred_check
      _
    $region23: #{linear_relu.1} parent=1 // pred_check_branch
      %96 = sbr.rel (0) target = $region25
    $region24: #{linear_relu.1} parent=1 // pred_region
      %98 = vsyncadd [#allocation4], 0
      %s100 = sshll.u32 [#allocation7], 4
      %s101 = int_to_ptr.vmem [resolvable:$true] %s100
      %s102 = sshll.u32 %s3, 4
      %s103 = int_to_ptr.hbm [resolvable:$true] %s102
      %105 = dma.vmem_to_hbm [thread:$0]  %s101, 128, %s103, [#allocation4]
    $region25: #{linear_relu.1} parent=1 // pred_fallthru
      _
    // Predicated region
    $region26: #{linear_relu.1} parent=1 // pred_check
      _
    $region27: #{linear_relu.1} parent=1 // pred_check_branch
      %107 = sbr.rel (0) target = $region29
    $region28: #{linear_relu.1} parent=1 // pred_region
      %109 = dma.done [#allocation4], 128
    $region29: #{linear_relu.1} parent=1 // pred_fallthru
      _
    %110 = vsyncpa [#allocation3], 1
    %111 = vsyncpa [#allocation6], 1
    %112 = vsyncpa [#allocation4], 1

</llo_original>
